<compile_context>
chip_gen: v7x
topology: tpu7x:2x2x1
jax: 0.10.0
libtpu: 0.0.40
codegen_flags: <defaults>
</compile_context>

<pallas_src>
import functools

import jax
import jax.numpy as jnp
from jax.experimental import pallas as pl
from jax.experimental.pallas import tpu as pltpu

HIDDEN = 64


# ----------------------------------------------------------------------------
# Pallas kernel: fused 3-layer MLP
# ----------------------------------------------------------------------------
def _regnn_kernel(x_ref, w1_ref, w2_ref, p_ref, o_ref):
    # x_ref: (T, D) bf16, w1_ref: (D, H) bf16, w2_ref: (H, H) bf16
    # p_ref: (8, H) f32 param slab -> row0=b1, row1=b2, row2=w3 (lane-major), row3[0]=b3
    x = x_ref[...]
    b1 = p_ref[0:1, :]          # (1, H)
    b2 = p_ref[1:2, :]          # (1, H)
    w3 = p_ref[2:3, :]          # (1, H) lane-major final-layer weight row
    b3 = p_ref[3:4, 0:1]        # (1, 1)

    # Layer 1: bf16 MXU matmul, f32 accumulate, bias + ReLU in f32.
    h1 = jnp.dot(x, w1_ref[...], preferred_element_type=jnp.float32) + b1
    h1 = jnp.maximum(h1, 0.0)

    # Layer 2: recast activation to bf16 to stay on the bf16 MXU path.
    h2 = jnp.dot(h1.astype(jnp.bfloat16), w2_ref[...],
                 preferred_element_type=jnp.float32) + b2
    h2 = jnp.maximum(h2, 0.0)

    # Layer 3 (K=64, N=1): VPU multiply by the lane-broadcast w3 row + XLU lane
    # reduction instead of an N=1 MXU matmul (frees an MXU push/pop per step).
    out = jnp.sum(h2 * w3, axis=-1, keepdims=True) + b3

    # (T, 1) output emits masked stores, but output volume is only 4*B bytes and the
    # store slot has ample slack under the MXU cadence that binds this kernel.
    # TODO(synk): lane-dense output layout if stores ever show up in the bundle dump.
    o_ref[...] = out.astype(o_ref.dtype)


@functools.partial(jax.jit, static_argnames=("tile_b",))
def regnn_forward(x, w1, b1, w2, b2, w3, b3, *, tile_b=512):
    """x: (B, D) float32 -> (B, 1) float32."""
    B, D = x.shape
    H = w1.shape[1]

    # Clamp the batch tile: full batch if B is small, otherwise tile_b (mult. of 8).
    if B <= tile_b:
        tile = B
    else:
        assert tile_b % 8 == 0, "tile_b must be a multiple of 8"
        tile = tile_b
    grid = (pl.cdiv(B, tile),)

    # bf16 operands for the MXU / HBM-traffic win; f32 accumulate inside the kernel.
    x_lo = x.astype(jnp.bfloat16)
    w1_lo = w1.astype(jnp.bfloat16)
    w2_lo = w2.astype(jnp.bfloat16)

    # Pack the small per-step operands into one (8, H) f32 slab (single aligned
    # sublane tile -> one BlockSpec / DMA instead of four).
    pslab = jnp.zeros((8, H), jnp.float32)
    pslab = pslab.at[0:1, :].set(jnp.reshape(b1, (1, H)).astype(jnp.float32))
    pslab = pslab.at[1:2, :].set(jnp.reshape(b2, (1, H)).astype(jnp.float32))
    pslab = pslab.at[2:3, :].set(jnp.reshape(w3, (1, H)).astype(jnp.float32))
    pslab = pslab.at[3, 0].set(jnp.reshape(b3, ()).astype(jnp.float32))

    # VMEM budget: double-buffered x tile + output tile + replicated weights,
    # plus headroom for f32 intermediates. Capped at 64 MiB (safe on v7x).
    est = 2 * (tile * D * 2 + tile * 4)              # x in (bf16) + out (f32), 2 bufs
    est += 2 * (D * H * 2 + H * H * 2 + 8 * H * 4)   # W1/W2 (bf16) + param slab, 2 bufs
    est += 4 * tile * H * 4                          # f32 intermediates / scratch
    vmem_limit = int(min(64 * 1024 * 1024, max(32 * 1024 * 1024, 2 * est)))

    return pl.pallas_call(
        _regnn_kernel,
        out_shape=jax.ShapeDtypeStruct((B, 1), jnp.float32),
        grid_spec=pltpu.PrefetchScalarGridSpec(
            num_scalar_prefetch=0,
            grid=grid,
            in_specs=[
                pl.BlockSpec((tile, D), lambda i: (i, 0)),   # x tile over batch
                pl.BlockSpec((D, H), lambda i: (0, 0)),      # W1 (replicated)
                pl.BlockSpec((H, H), lambda i: (0, 0)),      # W2 (replicated)
                pl.BlockSpec((8, H), lambda i: (0, 0)),      # param slab (b1,b2,w3,b3)
            ],
            out_specs=pl.BlockSpec((tile, 1), lambda i: (i, 0)),
        ),
        compiler_params=pltpu.CompilerParams(
            dimension_semantics=("parallel",),
            vmem_limit_bytes=vmem_limit,
        ),
    )(x_lo, w1_lo, w2_lo, pslab)


# ----------------------------------------------------------------------------
# Deterministic parameter init (mirrors torch.nn.init.orthogonal_ semantics)
# ----------------------------------------------------------------------------
def orthogonal(key, rows, cols):
    """Semi-orthogonal matrix of shape (rows, cols), like nn.init.orthogonal_."""
    a = jax.random.normal(key, (rows, cols), dtype=jnp.float32)
    if rows < cols:
        a = a.T
    q, r = jnp.linalg.qr(a)
    q = q * jnp.sign(jnp.diag(r))
    if rows < cols:
        q = q.T
    return q


def init_params(key, input_size, hidden=HIDDEN):
    k1, k2, k3, kb1, kb2, kb3 = jax.random.split(key, 6)
    # PyTorch Linear weight shape is (out, in); orthogonalize in that shape,
    # then transpose to (in, out) for the x @ W kernel layout.
    w1 = orthogonal(k1, hidden, input_size).T            # (D, H)
    w2 = orthogonal(k2, hidden, hidden).T                # (H, H)
    w3 = orthogonal(k3, 1, hidden).T                     # (H, 1)
    # PyTorch default bias init: U(-1/sqrt(fan_in), 1/sqrt(fan_in))
    b1 = jax.random.uniform(kb1, (1, hidden), minval=-1.0, maxval=1.0) / jnp.sqrt(input_size)
    b2 = jax.random.uniform(kb2, (1, hidden), minval=-1.0, maxval=1.0) / jnp.sqrt(hidden)
    b3 = jax.random.uniform(kb3, (1, 1), minval=-1.0, maxval=1.0) / jnp.sqrt(hidden)
    return (w1.astype(jnp.float32), b1.astype(jnp.float32),
            w2.astype(jnp.float32), b2.astype(jnp.float32),
            w3.astype(jnp.float32), b3.astype(jnp.float32))


def regnn_reference_bf16(x, w1, b1, w2, b2, w3, b3):
    """Pure-JAX reference using the same bf16-operand / f32-accumulate recipe."""
    H = w1.shape[1]
    h1 = jnp.dot(x.astype(jnp.bfloat16), w1.astype(jnp.bfloat16),
                 preferred_element_type=jnp.float32) + b1
    h1 = jnp.maximum(h1, 0.0)
    h2 = jnp.dot(h1.astype(jnp.bfloat16), w2.astype(jnp.bfloat16),
                 preferred_element_type=jnp.float32) + b2
    h2 = jnp.maximum(h2, 0.0)
    return jnp.sum(h2 * jnp.reshape(w3, (1, H)), axis=-1, keepdims=True) + b3


if __name__ == "__main__":
    key = jax.random.PRNGKey(0)
    kx, kp, kx2 = jax.random.split(key, 3)

    # Small primary test: batch=8, input_size=32.
    B, D = 8, 32
    x = jax.random.normal(kx, (B, D), dtype=jnp.float32)
    params = init_params(kp, D)

    out = regnn_forward(x, *params)
    out = jax.block_until_ready(out)
    ref = regnn_reference_bf16(x, *params)
    assert out.shape == (B, 1), out.shape
    assert jnp.allclose(out, ref, atol=1e-3, rtol=1e-3), "mismatch vs. reference (small)"

    # Second test: multi-step grid with a ragged final tile (B not a multiple of tile_b).
    B2 = 1100
    x2 = jax.random.normal(kx2, (B2, D), dtype=jnp.float32)
    out2 = regnn_forward(x2, *params, tile_b=512)
    out2 = jax.block_until_ready(out2)
    ref2 = regnn_reference_bf16(x2, *params)
    assert out2.shape == (B2, 1), out2.shape
    assert jnp.allclose(out2, ref2, atol=1e-3, rtol=1e-3), "mismatch vs. reference (tiled)"

    print("KERNEL_OK")
</pallas_src>

<mosaic_0001>
module attributes {stable_mosaic.version = 11 : i64} {
  func.func @_regnn_kernel(%arg0: i32, %arg1: memref<8x32xbf16, #tpu.memory_space<vmem>>, %arg2: memref<32x64xbf16, #tpu.memory_space<vmem>>, %arg3: memref<64x64xbf16, #tpu.memory_space<vmem>>, %arg4: memref<8x64xf32, #tpu.memory_space<vmem>>, %arg5: memref<8x1xf32, #tpu.memory_space<vmem>>) attributes {dimension_semantics = [#tpu.dimension_semantics<parallel>], iteration_bounds = array<i64: 1>, scalar_prefetch = 0 : i64, scratch_operands = 0 : i64, tpu.core_type = #tpu.core_type<tc>, window_params = [{transform_indices = @transform_0, window_bounds = array<i64: 8, 32>}, {pipeline_mode = #tpu.pipeline_mode<synchronous>, transform_indices = @transform_1, window_bounds = array<i64: 32, 64>}, {pipeline_mode = #tpu.pipeline_mode<synchronous>, transform_indices = @transform_2, window_bounds = array<i64: 64, 64>}, {pipeline_mode = #tpu.pipeline_mode<synchronous>, transform_indices = @transform_3, window_bounds = array<i64: 8, 64>}, {transform_indices = @transform_4, window_bounds = array<i64: 8, 1>}]} {
    %c0 = arith.constant 0 : index
    %c0_0 = arith.constant 0 : index
    %0 = vector.load %arg1[%c0, %c0_0] : memref<8x32xbf16, #tpu.memory_space<vmem>>, vector<8x32xbf16>
    %c0_1 = arith.constant 0 : index
    %c0_2 = arith.constant 0 : index
    %1 = vector.load %arg4[%c0_1, %c0_2] : memref<8x64xf32, #tpu.memory_space<vmem>>, vector<1x64xf32>
    %c1 = arith.constant 1 : index
    %c0_3 = arith.constant 0 : index
    %2 = vector.load %arg4[%c1, %c0_3] : memref<8x64xf32, #tpu.memory_space<vmem>>, vector<1x64xf32>
    %c2 = arith.constant 2 : index
    %c0_4 = arith.constant 0 : index
    %3 = vector.load %arg4[%c2, %c0_4] : memref<8x64xf32, #tpu.memory_space<vmem>>, vector<1x64xf32>
    %c3 = arith.constant 3 : index
    %c0_5 = arith.constant 0 : index
    %4 = vector.load %arg4[%c3, %c0_5] : memref<8x64xf32, #tpu.memory_space<vmem>>, vector<1x1xf32>
    %c0_6 = arith.constant 0 : index
    %c0_7 = arith.constant 0 : index
    %5 = vector.load %arg2[%c0_6, %c0_7] : memref<32x64xbf16, #tpu.memory_space<vmem>>, vector<32x64xbf16>
    %cst = arith.constant dense<0.000000e+00> : vector<8x64xf32>
    %6 = tpu.matmul %0, %5, %cst {dimension_numbers = #tpu.dot_dimension_numbers<[1], [0], [0], [1], [0, 0, 1, 1], [], []>} : vector<8x32xbf16>, vector<32x64xbf16>, vector<8x64xf32> -> vector<8x64xf32>
    %7 = vector.broadcast %1 : vector<1x64xf32> to vector<8x64xf32>
    %8 = arith.addf %6, %7 : vector<8x64xf32>
    %cst_8 = arith.constant 0.000000e+00 : f32
    %9 = vector.broadcast %cst_8 : f32 to vector<8x64xf32>
    %10 = arith.maximumf %8, %9 : vector<8x64xf32>
    %11 = arith.truncf %10 : vector<8x64xf32> to vector<8x64xbf16>
    %c0_9 = arith.constant 0 : index
    %c0_10 = arith.constant 0 : index
    %12 = vector.load %arg3[%c0_9, %c0_10] : memref<64x64xbf16, #tpu.memory_space<vmem>>, vector<64x64xbf16>
    %cst_11 = arith.constant dense<0.000000e+00> : vector<8x64xf32>
    %13 = tpu.matmul %11, %12, %cst_11 {dimension_numbers = #tpu.dot_dimension_numbers<[1], [0], [0], [1], [0, 0, 1, 1], [], []>} : vector<8x64xbf16>, vector<64x64xbf16>, vector<8x64xf32> -> vector<8x64xf32>
    %14 = vector.broadcast %2 : vector<1x64xf32> to vector<8x64xf32>
    %15 = arith.addf %13, %14 : vector<8x64xf32>
    %cst_12 = arith.constant 0.000000e+00 : f32
    %16 = vector.broadcast %cst_12 : f32 to vector<8x64xf32>
    %17 = arith.maximumf %15, %16 : vector<8x64xf32>
    %18 = vector.broadcast %3 : vector<1x64xf32> to vector<8x64xf32>
    %19 = arith.mulf %17, %18 : vector<8x64xf32>
    %cst_13 = arith.constant dense<0.000000e+00> : vector<8xf32>
    %20 = vector.multi_reduction <add>, %19, %cst_13 [1] : vector<8x64xf32> to vector<8xf32>
    %21 = vector.shape_cast %20 : vector<8xf32> to vector<8x1xf32>
    %22 = vector.broadcast %4 : vector<1x1xf32> to vector<8x1xf32>
    %23 = arith.addf %21, %22 : vector<8x1xf32>
    %c0_14 = arith.constant 0 : index
    %c0_15 = arith.constant 0 : index
    %24 = vector.load %arg5[%c0_14, %c0_15] : memref<8x1xf32, #tpu.memory_space<vmem>>, vector<8x1xf32>
    tpu.vector_store %arg5[%c0_14, %c0_15], %23 {strides = array<i32>} : memref<8x1xf32, #tpu.memory_space<vmem>>, vector<8x1xf32>,
    return
  }
  func.func @transform_0(%arg0: i32) -> (i32, i32) {
    %c0_i32 = arith.constant 0 : i32
    %c0_i32_0 = arith.constant 0 : i32
    return %arg0, %c0_i32 : i32, i32
  }
  func.func @transform_1(%arg0: i32) -> (i32, i32) {
    %c0_i32 = arith.constant 0 : i32
    %c0_i32_0 = arith.constant 0 : i32
    %c0_i32_1 = arith.constant 0 : i32
    return %c0_i32, %c0_i32_0 : i32, i32
  }
  func.func @transform_2(%arg0: i32) -> (i32, i32) {
    %c0_i32 = arith.constant 0 : i32
    %c0_i32_0 = arith.constant 0 : i32
    %c0_i32_1 = arith.constant 0 : i32
    return %c0_i32, %c0_i32_0 : i32, i32
  }
  func.func @transform_3(%arg0: i32) -> (i32, i32) {
    %c0_i32 = arith.constant 0 : i32
    %c0_i32_0 = arith.constant 0 : i32
    %c0_i32_1 = arith.constant 0 : i32
    return %c0_i32, %c0_i32_0 : i32, i32
  }
  func.func @transform_4(%arg0: i32) -> (i32, i32) {
    %c0_i32 = arith.constant 0 : i32
    %c0_i32_0 = arith.constant 0 : i32
    return %arg0, %c0_i32 : i32, i32
  }
}

</mosaic_0001>

<llo_original>
// kernel: regnn_forward.1
$region0: #{regnn_forward.1}
  #allocation0 [shape = 'u32[]', space=smem, size = 0x4, offset = 0x4, fixed_abs, tag = 'smem constant byte address 0x4 - core index']
  #allocation1 [shape = 'u32[144,128]{1,0:T(1,128)}', space=vmem, size = 0x12000, scoped, tag = 'internal scratch']
  %s0 = inlined_call_operand.vmem [shape: bf16[8,32], index: 0, kind: input, shape index: {}]
  %s1 = inlined_call_operand.vmem [shape: bf16[32,64], index: 1, kind: input, shape index: {}]
  %s2 = inlined_call_operand.vmem [shape: bf16[64,64], index: 2, kind: input, shape index: {}]
  %s3 = inlined_call_operand.vmem [shape: f32[8,64], index: 3, kind: input, shape index: {}]
  %s4 = inlined_call_operand.vmem [shape: f32[8,1], index: 4, kind: output, shape index: {}]
  %s5 = sld [smem:[#allocation0]]
  $region26: #{regnn_forward.1} parent=0
    _
  %s7 = ssub.s32 1, %s5
  %s8 = scalar_select 0, %s7, %s5
  // Predicated region
  $region2: #{regnn_forward.1} parent=0 // pred_check
    _
  $region3: #{regnn_forward.1} parent=0 // pred_check_branch
    %10 = sbr.rel (0) target = $region5
  $region4: #{regnn_forward.1} parent=0 // pred_region
    _
  $region5: #{regnn_forward.1} parent=0 // pred_fallthru
    _
  // Predicated region
  $region6: #{regnn_forward.1} parent=0 // pred_check
    _
  $region7: #{regnn_forward.1} parent=0 // pred_check_branch
    %12 = sbr.rel (0) target = $region9
  $region8: #{regnn_forward.1} parent=0 // pred_region
    _
  $region9: #{regnn_forward.1} parent=0 // pred_fallthru
    _
  // Predicated region
  $region10: #{regnn_forward.1} parent=0 // pred_check
    _
  $region11: #{regnn_forward.1} parent=0 // pred_check_branch
    %14 = sbr.rel (0) target = $region13
  $region12: #{regnn_forward.1} parent=0 // pred_region
    _
  $region13: #{regnn_forward.1} parent=0 // pred_fallthru
    _
  // Predicated region
  $region14: #{regnn_forward.1} parent=0 // pred_check
    _
  $region15: #{regnn_forward.1} parent=0 // pred_check_branch
    %16 = sbr.rel (0) target = $region17
  $region16: #{regnn_forward.1} parent=0 // pred_region
    _
  $region17: #{regnn_forward.1} parent=0 // pred_fallthru
    _
  %v18 = vld [vmem:[%s0] sm:$0xf]
  %v19 = vld [vmem:[%s3] sm:$0x1]
  %v20 = vld [vmem:[%s3 + $0x1] sm:$0x1]
  %v21 = vld [vmem:[%s3 + $0x2] sm:$0x1]
  %v22 = vld [vmem:[%s3 + $0x3] sm:$0x1]
  %v23 = vld [vmem:[%s1] sm:$0xf]
  %v24 = vld [vmem:[%s1 + $0x4] sm:$0xf]
  %v25 = vld [vmem:[%s1 + $0x8] sm:$0xf]
  %v26 = vld [vmem:[%s1 + $0xc] sm:$0xf]
  %v27 = vlaneseq
  %v28 = vshrl.u32 %v27, 7
  %v29 = vsub.s32 0, %v28
  %v30 = vrot.slane %v19, %v29
  %v35 = vunpack.c.l.b16 %v23
  %v36 = vunpack.c.l.b16 %v24
  %v37 = vunpack.c.l.b16 %v25
  %v38 = vunpack.c.l.b16 %v26
  %v39 = vpack.c.b16 %v36, %v35
  %v40 = vpack.c.b16 %v38, %v37
  %vm43 = vcmask 261120
  %v45 = vsel %vm43, %v18, 0
  %47 = vmatprep.subr.bf16.mxu0 0
  %48 = vmatpush1.bf16.msra.mxu0 %v39
  %49 = vmatprep.subr.bf16.mxu0 0
  %50 = vmatpush1.bf16.msra.mxu0 %v40
  %51 = vmatprep.subr.bf16.mxu0 0
  %52 = vmatpush1.bf16.msra.mxu0 0
  %53 = vmatprep.subr.bf16.mxu0 0
  %54 = vmatpush1.bf16.msra.mxu0 0
  %55 = vmatprep.subr.bf16.mxu0 0
  %56 = vmatpush1.bf16.msra.mxu0 0
  %57 = vmatprep.subr.bf16.mxu0 0
  %58 = vmatpush1.bf16.msra.mxu0 0
  %59 = vmatprep.subr.bf16.mxu0 0
  %60 = vmatpush1.bf16.msra.mxu0 0
  %61 = vmatprep.subr.bf16.mxu0 0
  %62 = vmatpush1.bf16.msra.mxu0 0
  %63 = vmatprep.subr.bf16.mxu0 0
  %64 = vmatpush1.bf16.msra.mxu0 0
  %65 = vmatprep.subr.bf16.mxu0 0
  %66 = vmatpush1.bf16.msra.mxu0 0
  %67 = vmatprep.subr.bf16.mxu0 0
  %68 = vmatpush1.bf16.msra.mxu0 0
  %69 = vmatprep.subr.bf16.mxu0 0
  %70 = vmatpush1.bf16.msra.mxu0 0
  %71 = vmatprep.subr.bf16.mxu0 0
  %72 = vmatpush1.bf16.msra.mxu0 0
  %73 = vmatprep.subr.bf16.mxu0 0
  %74 = vmatpush1.bf16.msra.mxu0 0
  %75 = vmatprep.subr.bf16.mxu0 0
  %76 = vmatpush1.bf16.msra.mxu0 0
  %77 = vmatprep.subr.bf16.mxu0 0
  %78 = vmatpush1.bf16.msra.mxu0 0
  %79 = vmatprep.mubr.bf16.mxu0 0
  %80 = vmatmul.mubr.bf16.gmra.mrb[0].mxu0 %v45
  %v81 = vpop.f32.mrb[0].mxu0
  %v82 = vadd.f32 %v30, %v81
  %v83 = vpop.f32.mrb[0].mxu0
  %v84 = vpop.f32.mrb[0].mxu0
  %v85 = vpop.f32.mrb[0].mxu0
  %86 = vdwg.mxu0
  %v87 = vmax.f32 %v82, 0.0
  %v88 = vpack.c.bf16 %v87, %v87
  %v89 = vld [vmem:[%s2] sm:$0xf]
  %v90 = vld [vmem:[%s2 + $0x4] sm:$0xf]
  %v91 = vld [vmem:[%s2 + $0x8] sm:$0xf]
  %v92 = vld [vmem:[%s2 + $0xc] sm:$0xf]
  %v93 = vld [vmem:[%s2 + $0x10] sm:$0xf]
  %v94 = vld [vmem:[%s2 + $0x14] sm:$0xf]
  %v95 = vld [vmem:[%s2 + $0x18] sm:$0xf]
  %v96 = vld [vmem:[%s2 + $0x1c] sm:$0xf]
  %v97 = vlaneseq
  %v98 = vshrl.u32 %v97, 7
  %v99 = vsub.s32 0, %v98
  %v100 = vrot.slane %v20, %v99
  %v109 = vunpack.c.l.b16 %v89
  %v110 = vunpack.c.l.b16 %v90
  %v111 = vunpack.c.l.b16 %v91
  %v112 = vunpack.c.l.b16 %v92
  %v113 = vunpack.c.l.b16 %v93
  %v114 = vunpack.c.l.b16 %v94
  %v115 = vunpack.c.l.b16 %v95
  %v116 = vunpack.c.l.b16 %v96
  %v117 = vpack.c.b16 %v110, %v109
  %v118 = vpack.c.b16 %v112, %v111
  %v119 = vpack.c.b16 %v114, %v113
  %v120 = vpack.c.b16 %v116, %v115
  %vm125 = vcmask 523264
  %v127 = vsel %vm125, %v88, 0
  %129 = vmatprep.subr.bf16.mxu0 0
  %130 = vmatpush1.bf16.msra.mxu0 %v117
  %131 = vmatprep.subr.bf16.mxu0 0
  %132 = vmatpush1.bf16.msra.mxu0 %v118
  %133 = vmatprep.subr.bf16.mxu0 0
  %134 = vmatpush1.bf16.msra.mxu0 %v119
  %135 = vmatprep.subr.bf16.mxu0 0
  %136 = vmatpush1.bf16.msra.mxu0 %v120
  %137 = vmatprep.subr.bf16.mxu0 0
  %138 = vmatpush1.bf16.msra.mxu0 0
  %139 = vmatprep.subr.bf16.mxu0 0
  %140 = vmatpush1.bf16.msra.mxu0 0
  %141 = vmatprep.subr.bf16.mxu0 0
  %142 = vmatpush1.bf16.msra.mxu0 0
  %143 = vmatprep.subr.bf16.mxu0 0
  %144 = vmatpush1.bf16.msra.mxu0 0
  %145 = vmatprep.subr.bf16.mxu0 0
  %146 = vmatpush1.bf16.msra.mxu0 0
  %147 = vmatprep.subr.bf16.mxu0 0
  %148 = vmatpush1.bf16.msra.mxu0 0
  %149 = vmatprep.subr.bf16.mxu0 0
  %150 = vmatpush1.bf16.msra.mxu0 0
  %151 = vmatprep.subr.bf16.mxu0 0
  %152 = vmatpush1.bf16.msra.mxu0 0
  %153 = vmatprep.subr.bf16.mxu0 0
  %154 = vmatpush1.bf16.msra.mxu0 0
  %155 = vmatprep.subr.bf16.mxu0 0
  %156 = vmatpush1.bf16.msra.mxu0 0
  %157 = vmatprep.subr.bf16.mxu0 0
  %158 = vmatpush1.bf16.msra.mxu0 0
  %159 = vmatprep.subr.bf16.mxu0 0
  %160 = vmatpush1.bf16.msra.mxu0 0
  %161 = vmatprep.mubr.bf16.mxu0 0
  %162 = vmatmul.mubr.bf16.gmra.mrb[0].mxu0 %v127
  %v163 = vpop.f32.mrb[0].mxu0
  %v164 = vadd.f32 %v100, %v163
  %v165 = vpop.f32.mrb[0].mxu0
  %v166 = vpop.f32.mrb[0].mxu0
  %v167 = vpop.f32.mrb[0].mxu0
  %168 = vdwg.mxu0
  %v169 = vmax.f32 %v164, 0.0
  %v170 = vlaneseq
  %v171 = vshrl.u32 %v170, 7
  %v172 = vsub.s32 0, %v171
  %v173 = vrot.slane %v21, %v172
  %v174 = vmul.f32 %v169, %v173
  %v175 = vsel %vm125, %v174, 0.0
  %176 = vadd.xlane.f32.xlu0 %v175
  %v177 = vpop.xlane.xlu0 %176
  %v178 = vlaneseq
  %v179 = vshrl.u32 %v178, 7
  %v180 = vsub.s32 0, %v179
  %v181 = vrot.slane %v22, %v180
  %v182 = vadd.f32 %v177, %v181
  %vm183 = vcmask 7168
  %184 = vst.msk [vmem:[%s4] sm:$0xff] %vm183, %v182
  // Predicated region
  $region18: #{regnn_forward.1} parent=0 // pred_check
    _
  $region19: #{regnn_forward.1} parent=0 // pred_check_branch
    %186 = sbr.rel (0) target = $region21
  $region20: #{regnn_forward.1} parent=0 // pred_region
    _
  $region21: #{regnn_forward.1} parent=0 // pred_fallthru
    _
  // Predicated region
  $region22: #{regnn_forward.1} parent=0 // pred_check
    _
  $region23: #{regnn_forward.1} parent=0 // pred_check_branch
    %188 = sbr.rel (0) target = $region25
  $region24: #{regnn_forward.1} parent=0 // pred_region
    _
  $region25: #{regnn_forward.1} parent=0 // pred_fallthru
    _

</llo_original>
